<compile_context>
chip_gen: v6e
topology: v6e:2x2x1
jax: 0.10.0
libtpu: 0.0.40
codegen_flags: <defaults>
</compile_context>

<pallas_src>
import jax
import jax.numpy as jnp
from jax.experimental import pallas as pl
from jax.experimental.pallas import tpu as pltpu


def _round_up(n, m):
    return (n + m - 1) // m * m


def mlp_kernel(x_ref, w1_ref, b1_ref, w2_ref, b2_ref, o_ref):
    # fc1 (bf16 operands -> f32 accumulate on the MXU) + bias + ReLU in f32.
    x = x_ref[...].astype(jnp.bfloat16)
    w1 = w1_ref[...].astype(jnp.bfloat16)
    h = jnp.dot(x, w1, preferred_element_type=jnp.float32)
    h = jnp.maximum(h + b1_ref[...], 0.0)

    # fc2 (bf16 operands -> f32 accumulate) + bias in f32.
    w2 = w2_ref[...].astype(jnp.bfloat16)
    y = jnp.dot(h.astype(jnp.bfloat16), w2, preferred_element_type=jnp.float32)
    o_ref[...] = (y + b2_ref[...]).astype(o_ref.dtype)


def net_forward(x, w1, b1, w2, b2, *, block_b=512):
    """Fused two-layer MLP (Linear -> ReLU -> Linear) as one Pallas kernel.

    x : (B, input_size)         float32
    w1: (input_size, hidden)    float32   (transposed vs. torch fc1.weight)
    b1: (hidden,)               float32
    w2: (hidden, num_classes)   float32   (transposed vs. torch fc2.weight)
    b2: (num_classes,)          float32
    returns: (B, num_classes)   float32
    """
    B, K = x.shape
    H = w1.shape[1]
    C = w2.shape[1]

    # Lane dims -> multiples of 128 (lane-dense loads/stores, full MXU columns);
    # batch (sublane) -> multiple of 16 (bf16 sublane packing).
    Kp = _round_up(K, 128)
    Hp = _round_up(H, 128)
    Cp = _round_up(C, 128)
    Bp = _round_up(B, 16)

    # Batch tile size: whole (padded) batch for small problems, otherwise
    # block_b-row tiles so activations stay well inside VMEM (v7x: 64 MiB).
    bm = min(Bp, _round_up(block_b, 16))
    Bp = _round_up(Bp, bm)

    f32 = x.dtype
    xp = jnp.zeros((Bp, Kp), f32).at[:B, :K].set(x)
    w1p = jnp.zeros((Kp, Hp), f32).at[:K, :H].set(w1)
    b1p = jnp.zeros((1, Hp), f32).at[0, :H].set(b1.reshape(-1))
    w2p = jnp.zeros((Hp, Cp), f32).at[:H, :C].set(w2)
    b2p = jnp.zeros((1, Cp), f32).at[0, :C].set(b2.reshape(-1))

    grid = (Bp // bm,)

    out = pl.pallas_call(
        mlp_kernel,
        out_shape=jax.ShapeDtypeStruct((Bp, Cp), f32),
        grid_spec=pltpu.PrefetchScalarGridSpec(
            num_scalar_prefetch=0,
            grid=grid,
            in_specs=[
                pl.BlockSpec((bm, Kp), lambda i: (i, 0)),   # x tile (batch-tiled)
                pl.BlockSpec((Kp, Hp), lambda i: (0, 0)),   # w1 (VMEM-resident)
                pl.BlockSpec((1, Hp), lambda i: (0, 0)),    # b1
                pl.BlockSpec((Hp, Cp), lambda i: (0, 0)),   # w2 (VMEM-resident)
                pl.BlockSpec((1, Cp), lambda i: (0, 0)),    # b2
            ],
            out_specs=pl.BlockSpec((bm, Cp), lambda i: (i, 0)),
        ),
        compiler_params=pltpu.CompilerParams(
            dimension_semantics=("parallel",),
        ),
    )(xp, w1p, b1p, w2p, b2p)

    return out[:B, :C]


def reference_forward(x, w1, b1, w2, b2):
    h = jnp.maximum(x @ w1 + b1.reshape(1, -1), 0.0)
    return h @ w2 + b2.reshape(1, -1)


if __name__ == "__main__":
    # Shapes implied by the module: Linear(input_size, hidden), Linear(hidden, C)
    batch, input_size, hidden_size, num_classes = 8, 16, 32, 4

    key = jax.random.PRNGKey(0)
    kx, k1, k2, k3, k4 = jax.random.split(key, 5)

    x = jax.random.normal(kx, (batch, input_size), dtype=jnp.float32)
    # Deterministic "Kaiming-ish" init, stored as (in, out) for the kernel.
    w1 = jax.random.normal(k1, (input_size, hidden_size), dtype=jnp.float32) * 0.1
    b1 = jax.random.normal(k2, (hidden_size,), dtype=jnp.float32) * 0.01
    w2 = jax.random.normal(k3, (hidden_size, num_classes), dtype=jnp.float32) * 0.1
    b2 = jax.random.normal(k4, (num_classes,), dtype=jnp.float32) * 0.01

    out = net_forward(x, w1, b1, w2, b2)
    jax.block_until_ready(out)

    ref = reference_forward(x, w1, b1, w2, b2)
    assert out.shape == (batch, num_classes)
    # bf16 MXU operands with f32 accumulation -> relaxed tolerance vs f32 ref.
    assert jnp.allclose(out, ref, atol=3e-2, rtol=3e-2), "mismatch vs reference"

    print("KERNEL_OK")
</pallas_src>

<mosaic_0001>
module attributes {stable_mosaic.version = 11 : i64} {
  func.func @mlp_kernel(%arg0: i32, %arg1: memref<16x128xf32, #tpu.memory_space<vmem>>, %arg2: memref<128x128xf32, #tpu.memory_space<vmem>>, %arg3: memref<1x128xf32, #tpu.memory_space<vmem>>, %arg4: memref<128x128xf32, #tpu.memory_space<vmem>>, %arg5: memref<1x128xf32, #tpu.memory_space<vmem>>, %arg6: memref<16x128xf32, #tpu.memory_space<vmem>>) attributes {dimension_semantics = [#tpu.dimension_semantics<parallel>], iteration_bounds = array<i64: 1>, scalar_prefetch = 0 : i64, scratch_operands = 0 : i64, tpu.core_type = #tpu.core_type<tc>, window_params = [{transform_indices = @transform_0, window_bounds = array<i64: 16, 128>}, {pipeline_mode = #tpu.pipeline_mode<synchronous>, transform_indices = @transform_1, window_bounds = array<i64: 128, 128>}, {pipeline_mode = #tpu.pipeline_mode<synchronous>, transform_indices = @transform_2, window_bounds = array<i64: 1, 128>}, {pipeline_mode = #tpu.pipeline_mode<synchronous>, transform_indices = @transform_3, window_bounds = array<i64: 128, 128>}, {pipeline_mode = #tpu.pipeline_mode<synchronous>, transform_indices = @transform_4, window_bounds = array<i64: 1, 128>}, {transform_indices = @transform_5, window_bounds = array<i64: 16, 128>}]} {
    %c0 = arith.constant 0 : index
    %c0_0 = arith.constant 0 : index
    %0 = vector.load %arg1[%c0, %c0_0] : memref<16x128xf32, #tpu.memory_space<vmem>>, vector<16x128xf32>
    %1 = arith.truncf %0 : vector<16x128xf32> to vector<16x128xbf16>
    %c0_1 = arith.constant 0 : index
    %c0_2 = arith.constant 0 : index
    %2 = vector.load %arg2[%c0_1, %c0_2] : memref<128x128xf32, #tpu.memory_space<vmem>>, vector<128x128xf32>
    %3 = arith.truncf %2 : vector<128x128xf32> to vector<128x128xbf16>
    %cst = arith.constant dense<0.000000e+00> : vector<16x128xf32>
    %4 = tpu.matmul %1, %3, %cst {dimension_numbers = #tpu.dot_dimension_numbers<[1], [0], [0], [1], [0, 0, 1, 1], [], []>} : vector<16x128xbf16>, vector<128x128xbf16>, vector<16x128xf32> -> vector<16x128xf32>
    %c0_3 = arith.constant 0 : index
    %c0_4 = arith.constant 0 : index
    %5 = vector.load %arg3[%c0_3, %c0_4] : memref<1x128xf32, #tpu.memory_space<vmem>>, vector<1x128xf32>
    %6 = vector.broadcast %5 : vector<1x128xf32> to vector<16x128xf32>
    %7 = arith.addf %4, %6 : vector<16x128xf32>
    %cst_5 = arith.constant 0.000000e+00 : f32
    %8 = vector.broadcast %cst_5 : f32 to vector<16x128xf32>
    %9 = arith.maximumf %7, %8 : vector<16x128xf32>
    %c0_6 = arith.constant 0 : index
    %c0_7 = arith.constant 0 : index
    %10 = vector.load %arg4[%c0_6, %c0_7] : memref<128x128xf32, #tpu.memory_space<vmem>>, vector<128x128xf32>
    %11 = arith.truncf %10 : vector<128x128xf32> to vector<128x128xbf16>
    %12 = arith.truncf %9 : vector<16x128xf32> to vector<16x128xbf16>
    %cst_8 = arith.constant dense<0.000000e+00> : vector<16x128xf32>
    %13 = tpu.matmul %12, %11, %cst_8 {dimension_numbers = #tpu.dot_dimension_numbers<[1], [0], [0], [1], [0, 0, 1, 1], [], []>} : vector<16x128xbf16>, vector<128x128xbf16>, vector<16x128xf32> -> vector<16x128xf32>
    %c0_9 = arith.constant 0 : index
    %c0_10 = arith.constant 0 : index
    %14 = vector.load %arg5[%c0_9, %c0_10] : memref<1x128xf32, #tpu.memory_space<vmem>>, vector<1x128xf32>
    %15 = vector.broadcast %14 : vector<1x128xf32> to vector<16x128xf32>
    %16 = arith.addf %13, %15 : vector<16x128xf32>
    %c0_11 = arith.constant 0 : index
    %c0_12 = arith.constant 0 : index
    %17 = vector.load %arg6[%c0_11, %c0_12] : memref<16x128xf32, #tpu.memory_space<vmem>>, vector<16x128xf32>
    tpu.vector_store %arg6[%c0_11, %c0_12], %16 {strides = array<i32>} : memref<16x128xf32, #tpu.memory_space<vmem>>, vector<16x128xf32>,
    return
  }
  func.func @transform_0(%arg0: i32) -> (i32, i32) {
    %c0_i32 = arith.constant 0 : i32
    %c0_i32_0 = arith.constant 0 : i32
    return %arg0, %c0_i32 : i32, i32
  }
  func.func @transform_1(%arg0: i32) -> (i32, i32) {
    %c0_i32 = arith.constant 0 : i32
    %c0_i32_0 = arith.constant 0 : i32
    %c0_i32_1 = arith.constant 0 : i32
    return %c0_i32, %c0_i32_0 : i32, i32
  }
  func.func @transform_2(%arg0: i32) -> (i32, i32) {
    %c0_i32 = arith.constant 0 : i32
    %c0_i32_0 = arith.constant 0 : i32
    %c0_i32_1 = arith.constant 0 : i32
    return %c0_i32, %c0_i32_0 : i32, i32
  }
  func.func @transform_3(%arg0: i32) -> (i32, i32) {
    %c0_i32 = arith.constant 0 : i32
    %c0_i32_0 = arith.constant 0 : i32
    %c0_i32_1 = arith.constant 0 : i32
    return %c0_i32, %c0_i32_0 : i32, i32
  }
  func.func @transform_4(%arg0: i32) -> (i32, i32) {
    %c0_i32 = arith.constant 0 : i32
    %c0_i32_0 = arith.constant 0 : i32
    %c0_i32_1 = arith.constant 0 : i32
    return %c0_i32, %c0_i32_0 : i32, i32
  }
  func.func @transform_5(%arg0: i32) -> (i32, i32) {
    %c0_i32 = arith.constant 0 : i32
    %c0_i32_0 = arith.constant 0 : i32
    return %arg0, %c0_i32 : i32, i32
  }
}

</mosaic_0001>

<llo_original>
// kernel: tpu_custom_call.1
$region0: #{tpu_custom_call.1}
  #allocation0 [shape = 'u32[]', space=smem, size = 0x4, offset = 0x4, fixed_abs, tag = 'smem constant byte address 0x4 - core index']
  #allocation1 [shape = 'u32[144,128]{1,0:T(1,128)}', space=vmem, size = 0x12000, scoped, tag = 'internal scratch']
  %s0 = inlined_call_operand.hbm [shape: f32[16,128], index: 0, kind: input, shape index: {}]
  %s1 = inlined_call_operand.hbm [shape: f32[128,128], index: 1, kind: input, shape index: {}]
  %s2 = inlined_call_operand.vmem [shape: f32[1,128], index: 2, kind: input, shape index: {}]
  %s3 = inlined_call_operand.hbm [shape: f32[128,128], index: 3, kind: input, shape index: {}]
  %s4 = inlined_call_operand.vmem [shape: f32[1,128], index: 4, kind: input, shape index: {}]
  %s5 = inlined_call_operand.hbm [shape: f32[16,128], index: 5, kind: output, shape index: {}]
  %s6 = sld [smem:[#allocation0]]
  $region42: #{tpu_custom_call.1} parent=0
    _
  %s8 = ssub.s32 1, %s6
  %s9 = scalar_select 0, %s8, %s6
  $region1: #{tpu_custom_call.1} parent=0
    #allocation2 [shape = 'u8[8192]{0}', space=vmem, size = 0x2000, scoped, tag = 'input window, operand 0, single buffered']
    #allocation3 [shape = 's32[1]{0}', space=sflag, size = 0x4, scoped, tag = 'scoped memory for tpu_custom_call.1']
    #allocation4 [shape = 's32[1]{0}', space=sflag, size = 0x4, scoped, tag = 'scoped memory for tpu_custom_call.1']
    #allocation5 [shape = 'u8[65536]{0}', space=vmem, size = 0x10000, scoped, tag = 'input window, operand 1, single buffered']
    #allocation6 [shape = 's32[1]{0}', space=sflag, size = 0x4, scoped, tag = 'scoped memory for tpu_custom_call.1']
    #allocation7 [shape = 'u8[65536]{0}', space=vmem, size = 0x10000, scoped, tag = 'input window, operand 3, single buffered']
    #allocation8 [shape = 'u8[8192]{0}', space=vmem, size = 0x2000, scoped, tag = 'output window, operand 0, single buffered']
    %10 = vsyncpa [#allocation3], 0
    %11 = vsyncpa [#allocation6], 0
    %12 = vsyncpa [#allocation4], 0
    // Predicated region
    $region2: #{tpu_custom_call.1} parent=1 // pred_check
      _
    $region3: #{tpu_custom_call.1} parent=1 // pred_check_branch
      %14 = sbr.rel (0) target = $region5
    $region4: #{tpu_custom_call.1} parent=1 // pred_region
      %s16 = ssub.s32 256, 256
      %17 = vsyncadd [#allocation3], %s16
      %s18 = sshll.u32 [#allocation2], 4
      %s19 = int_to_ptr.vmem [resolvable:$true] %s18
      %24 = dma.hbm_to_vmem [thread:$0]  %s0, 256, %s19, [#allocation3], 128, 128, 8
    $region5: #{tpu_custom_call.1} parent=1 // pred_fallthru
      _
    // Predicated region
    $region6: #{tpu_custom_call.1} parent=1 // pred_check
      _
    $region7: #{tpu_custom_call.1} parent=1 // pred_check_branch
      %26 = sbr.rel (0) target = $region9
    $region8: #{tpu_custom_call.1} parent=1 // pred_region
      %s28 = ssub.s32 2048, 2048
      %29 = vsyncadd [#allocation6], %s28
      %s30 = sshll.u32 [#allocation5], 4
      %s31 = int_to_ptr.vmem [resolvable:$true] %s30
      %36 = dma.hbm_to_vmem [thread:$0]  %s1, 2048, %s31, [#allocation6], 128, 128, 8
    $region9: #{tpu_custom_call.1} parent=1 // pred_fallthru
      _
    // Predicated region
    $region10: #{tpu_custom_call.1} parent=1 // pred_check
      _
    $region11: #{tpu_custom_call.1} parent=1 // pred_check_branch
      %38 = sbr.rel (0) target = $region13
    $region12: #{tpu_custom_call.1} parent=1 // pred_region
      _
    $region13: #{tpu_custom_call.1} parent=1 // pred_fallthru
      _
    // Predicated region
    $region14: #{tpu_custom_call.1} parent=1 // pred_check
      _
    $region15: #{tpu_custom_call.1} parent=1 // pred_check_branch
      %40 = sbr.rel (0) target = $region17
    $region16: #{tpu_custom_call.1} parent=1 // pred_region
      %s42 = ssub.s32 2048, 2048
      %43 = vsyncadd [#allocation6], %s42
      %s44 = sshll.u32 [#allocation7], 4
      %s45 = int_to_ptr.vmem [resolvable:$true] %s44
      %50 = dma.hbm_to_vmem [thread:$0]  %s3, 2048, %s45, [#allocation6], 128, 128, 8
    $region17: #{tpu_custom_call.1} parent=1 // pred_fallthru
      _
    // Predicated region
    $region18: #{tpu_custom_call.1} parent=1 // pred_check
      _
    $region19: #{tpu_custom_call.1} parent=1 // pred_check_branch
      %52 = sbr.rel (0) target = $region21
    $region20: #{tpu_custom_call.1} parent=1 // pred_region
      _
    $region21: #{tpu_custom_call.1} parent=1 // pred_fallthru
      _
    // Predicated region
    $region22: #{tpu_custom_call.1} parent=1 // pred_check
      _
    $region23: #{tpu_custom_call.1} parent=1 // pred_check_branch
      %54 = sbr.rel (0) target = $region25
    $region24: #{tpu_custom_call.1} parent=1 // pred_region
      %55 = dma.done [#allocation3], 256
    $region25: #{tpu_custom_call.1} parent=1 // pred_fallthru
      _
    // Predicated region
    $region26: #{tpu_custom_call.1} parent=1 // pred_check
      _
    $region27: #{tpu_custom_call.1} parent=1 // pred_check_branch
      %57 = sbr.rel (0) target = $region29
    $region28: #{tpu_custom_call.1} parent=1 // pred_region
      %58 = dma.done [#allocation6], 2048
    $region29: #{tpu_custom_call.1} parent=1 // pred_fallthru
      _
    // Predicated region
    $region30: #{tpu_custom_call.1} parent=1 // pred_check
      _
    $region31: #{tpu_custom_call.1} parent=1 // pred_check_branch
      %60 = sbr.rel (0) target = $region33
    $region32: #{tpu_custom_call.1} parent=1 // pred_region
      %61 = dma.done [#allocation6], 2048
    $region33: #{tpu_custom_call.1} parent=1 // pred_fallthru
      _
    %v63 = vld [vmem:[#allocation2] sm:$0xff]
    %v64 = vld [vmem:[#allocation2 + $0x8] sm:$0xff]
    %v65 = vpack.c.bf16 %v64, %v63
    %v66 = vld [vmem:[#allocation5] sm:$0xff]
    %v67 = vld [vmem:[#allocation5 + $0x8] sm:$0xff]
    %v68 = vld [vmem:[#allocation5 + $0x10] sm:$0xff]
    %v69 = vld [vmem:[#allocation5 + $0x18] sm:$0xff]
    %v70 = vld [vmem:[#allocation5 + $0x20] sm:$0xff]
    %v71 = vld [vmem:[#allocation5 + $0x28] sm:$0xff]
    %v72 = vld [vmem:[#allocation5 + $0x30] sm:$0xff]
    %v73 = vld [vmem:[#allocation5 + $0x38] sm:$0xff]
    %v74 = vld [vmem:[#allocation5 + $0x40] sm:$0xff]
    %v75 = vld [vmem:[#allocation5 + $0x48] sm:$0xff]
    %v76 = vld [vmem:[#allocation5 + $0x50] sm:$0xff]
    %v77 = vld [vmem:[#allocation5 + $0x58] sm:$0xff]
    %v78 = vld [vmem:[#allocation5 + $0x60] sm:$0xff]
    %v79 = vld [vmem:[#allocation5 + $0x68] sm:$0xff]
    %v80 = vld [vmem:[#allocation5 + $0x70] sm:$0xff]
    %v81 = vld [vmem:[#allocation5 + $0x78] sm:$0xff]
    %v82 = vpack.c.bf16 %v67, %v66
    %v83 = vpack.c.bf16 %v69, %v68
    %v84 = vpack.c.bf16 %v71, %v70
    %v85 = vpack.c.bf16 %v73, %v72
    %v86 = vpack.c.bf16 %v75, %v74
    %v87 = vpack.c.bf16 %v77, %v76
    %v88 = vpack.c.bf16 %v79, %v78
    %v89 = vpack.c.bf16 %v81, %v80
    %v90 = vld [vmem:[%s2] sm:$0x1]
    %v92 = vlaneseq
    %v93 = vshrl.u32 %v92, 7
    %v94 = vsub.s32 0, %v93
    %v95 = vrot.slane %v90, %v94
    %97 = vmatprep.subr.bf16.mxu0 0
    %98 = vmatpush1.bf16.msra.mxu0 %v89
    %99 = vmatprep.subr.bf16.mxu0 0
    %100 = vmatpush1.bf16.msra.mxu0 %v88
    %101 = vmatprep.subr.bf16.mxu0 0
    %102 = vmatpush1.bf16.msra.mxu0 %v87
    %103 = vmatprep.subr.bf16.mxu0 0
    %104 = vmatpush1.bf16.msra.mxu0 %v86
    %105 = vmatprep.subr.bf16.mxu0 0
    %106 = vmatpush1.bf16.msra.mxu0 %v85
    %107 = vmatprep.subr.bf16.mxu0 0
    %108 = vmatpush1.bf16.msra.mxu0 %v84
    %109 = vmatprep.subr.bf16.mxu0 0
    %110 = vmatpush1.bf16.msra.mxu0 %v83
    %111 = vmatprep.subr.bf16.mxu0 0
    %112 = vmatpush1.bf16.msra.mxu0 %v82
    %113 = vmatprep.subr.bf16.mxu0 0
    %114 = vmatpush2.bf16.msra.mxu0 0
    %115 = vmatprep.subr.bf16.mxu0 0
    %116 = vmatpush2.bf16.msra.mxu0 0
    %117 = vmatprep.subr.bf16.mxu0 0
    %118 = vmatpush2.bf16.msra.mxu0 0
    %119 = vmatprep.subr.bf16.mxu0 0
    %120 = vmatpush2.bf16.msra.mxu0 0
    %121 = vmatprep.subr.bf16.mxu0 0
    %122 = vmatpush2.bf16.msra.mxu0 0
    %123 = vmatprep.subr.bf16.mxu0 0
    %124 = vmatpush2.bf16.msra.mxu0 0
    %125 = vmatprep.subr.bf16.mxu0 0
    %126 = vmatpush2.bf16.msra.mxu0 0
    %127 = vmatprep.subr.bf16.mxu0 0
    %128 = vmatpush2.bf16.msra.mxu0 0
    %129 = vmatprep.mubr.bf16.mxu0 0
    %130 = vmatmul.mubr.bf16.gmra.mxu0 %v65
    %v131 = vpop.f32.mrf.mxu0
    %v132 = vadd.f32 %v95, %v131
    %v133 = vpop.f32.mrf.mxu0
    %v134 = vpop.f32.mrf.mxu0
    %v135 = vadd.f32 %v95, %v134
    %v136 = vpop.f32.mrf.mxu0
    %137 = vdwg.mxu0
    %v138 = vmax.f32 %v132, 0.0
    %v139 = vmax.f32 %v135, 0.0
    %v140 = vld [vmem:[#allocation7] sm:$0xff]
    %v141 = vld [vmem:[#allocation7 + $0x8] sm:$0xff]
    %v142 = vld [vmem:[#allocation7 + $0x10] sm:$0xff]
    %v143 = vld [vmem:[#allocation7 + $0x18] sm:$0xff]
    %v144 = vld [vmem:[#allocation7 + $0x20] sm:$0xff]
    %v145 = vld [vmem:[#allocation7 + $0x28] sm:$0xff]
    %v146 = vld [vmem:[#allocation7 + $0x30] sm:$0xff]
    %v147 = vld [vmem:[#allocation7 + $0x38] sm:$0xff]
    %v148 = vld [vmem:[#allocation7 + $0x40] sm:$0xff]
    %v149 = vld [vmem:[#allocation7 + $0x48] sm:$0xff]
    %v150 = vld [vmem:[#allocation7 + $0x50] sm:$0xff]
    %v151 = vld [vmem:[#allocation7 + $0x58] sm:$0xff]
    %v152 = vld [vmem:[#allocation7 + $0x60] sm:$0xff]
    %v153 = vld [vmem:[#allocation7 + $0x68] sm:$0xff]
    %v154 = vld [vmem:[#allocation7 + $0x70] sm:$0xff]
    %v155 = vld [vmem:[#allocation7 + $0x78] sm:$0xff]
    %v156 = vpack.c.bf16 %v141, %v140
    %v157 = vpack.c.bf16 %v143, %v142
    %v158 = vpack.c.bf16 %v145, %v144
    %v159 = vpack.c.bf16 %v147, %v146
    %v160 = vpack.c.bf16 %v149, %v148
    %v161 = vpack.c.bf16 %v151, %v150
    %v162 = vpack.c.bf16 %v153, %v152
    %v163 = vpack.c.bf16 %v155, %v154
    %v164 = vpack.c.bf16 %v139, %v138
    %v165 = vld [vmem:[%s4] sm:$0x1]
    %v167 = vlaneseq
    %v168 = vshrl.u32 %v167, 7
    %v169 = vsub.s32 0, %v168
    %v170 = vrot.slane %v165, %v169
    %172 = vmatprep.subr.bf16.mxu0 0
    %173 = vmatpush1.bf16.msra.mxu0 %v163
    %174 = vmatprep.subr.bf16.mxu0 0
    %175 = vmatpush1.bf16.msra.mxu0 %v162
    %176 = vmatprep.subr.bf16.mxu0 0
    %177 = vmatpush1.bf16.msra.mxu0 %v161
    %178 = vmatprep.subr.bf16.mxu0 0
    %179 = vmatpush1.bf16.msra.mxu0 %v160
    %180 = vmatprep.subr.bf16.mxu0 0
    %181 = vmatpush1.bf16.msra.mxu0 %v159
    %182 = vmatprep.subr.bf16.mxu0 0
    %183 = vmatpush1.bf16.msra.mxu0 %v158
    %184 = vmatprep.subr.bf16.mxu0 0
    %185 = vmatpush1.bf16.msra.mxu0 %v157
    %186 = vmatprep.subr.bf16.mxu0 0
    %187 = vmatpush1.bf16.msra.mxu0 %v156
    %188 = vmatprep.subr.bf16.mxu0 0
    %189 = vmatpush2.bf16.msra.mxu0 0
    %190 = vmatprep.subr.bf16.mxu0 0
    %191 = vmatpush2.bf16.msra.mxu0 0
    %192 = vmatprep.subr.bf16.mxu0 0
    %193 = vmatpush2.bf16.msra.mxu0 0
    %194 = vmatprep.subr.bf16.mxu0 0
    %195 = vmatpush2.bf16.msra.mxu0 0
    %196 = vmatprep.subr.bf16.mxu0 0
    %197 = vmatpush2.bf16.msra.mxu0 0
    %198 = vmatprep.subr.bf16.mxu0 0
    %199 = vmatpush2.bf16.msra.mxu0 0
    %200 = vmatprep.subr.bf16.mxu0 0
    %201 = vmatpush2.bf16.msra.mxu0 0
    %202 = vmatprep.subr.bf16.mxu0 0
    %203 = vmatpush2.bf16.msra.mxu0 0
    %204 = vmatprep.mubr.bf16.mxu0 0
    %205 = vmatmul.mubr.bf16.gmra.mxu0 %v164
    %v206 = vpop.f32.mrf.mxu0
    %v207 = vadd.f32 %v170, %v206
    %v208 = vpop.f32.mrf.mxu0
    %v209 = vpop.f32.mrf.mxu0
    %v210 = vadd.f32 %v170, %v209
    %v211 = vpop.f32.mrf.mxu0
    %212 = vdwg.mxu0
    %213 = vst [vmem:[#allocation8] sm:$0xff] %v207
    %214 = vst [vmem:[#allocation8 + $0x8] sm:$0xff] %v210
    // Predicated region
    $region34: #{tpu_custom_call.1} parent=1 // pred_check
      _
    $region35: #{tpu_custom_call.1} parent=1 // pred_check_branch
      %216 = sbr.rel (0) target = $region37
    $region36: #{tpu_custom_call.1} parent=1 // pred_region
      %s218 = ssub.s32 256, 256
      %219 = vsyncadd [#allocation4], %s218
      %s220 = sshll.u32 [#allocation8], 4
      %s221 = int_to_ptr.vmem [resolvable:$true] %s220
      %226 = dma.vmem_to_hbm [thread:$0]  %s221, 256, %s5, [#allocation4], 128, 128, 8
    $region37: #{tpu_custom_call.1} parent=1 // pred_fallthru
      _
    // Predicated region
    $region38: #{tpu_custom_call.1} parent=1 // pred_check
      _
    $region39: #{tpu_custom_call.1} parent=1 // pred_check_branch
      %228 = sbr.rel (0) target = $region41
    $region40: #{tpu_custom_call.1} parent=1 // pred_region
      %229 = dma.done [#allocation4], 256
    $region41: #{tpu_custom_call.1} parent=1 // pred_fallthru
      _
    %230 = vsyncpa [#allocation3], 1
    %231 = vsyncpa [#allocation6], 1
    %232 = vsyncpa [#allocation4], 1

</llo_original>
